<compile_context>
chip_gen: v7x
topology: tpu7x:2x2x1
jax: 0.10.0
libtpu: 0.0.40
codegen_flags: <defaults>
</compile_context>

<pallas_src>
import functools

import jax
import jax.numpy as jnp
from jax import lax
from jax.experimental import pallas as pl
from jax.experimental.pallas import tpu as pltpu


# --------------------------------------------------------------------------- #
# Kernel body
# --------------------------------------------------------------------------- #
def _mean_pool_kernel(x_ref, o_ref, acc_ref, *, inv_s, sub, n_sub):
    """x_ref: (TB, TS, H) tile; o_ref: (TB, H); acc_ref: (TB, H) f32 scratch."""
    k = pl.program_id(1)

    def chunk_sum(start):
        # Partial sum over a (TB, sub, H) slice, accumulated in f32.  Chunking
        # bounds the f32 upcast temp instead of materializing the whole tile.
        xc = x_ref[:, pl.ds(start, sub), :]
        return jnp.sum(xc.astype(jnp.float32), axis=1)

    first = chunk_sum(0)

    @pl.when(k == 0)
    def _():
        # First sequence block for this batch block: write directly (saves a
        # (TB, H) zero-fill + add per batch block).
        acc_ref[...] = first

    @pl.when(k != 0)
    def _():
        acc_ref[...] += first

    if n_sub > 1:
        def body(c, carry):
            acc_ref[...] += chunk_sum(pl.multiple_of(c * sub, sub))
            return carry

        lax.fori_loop(1, n_sub, body, 0, unroll=n_sub <= 8)

    @pl.when(k == pl.num_programs(1) - 1)
    def _():
        # Single multiply by 1/S at finalize (not per tile).
        o_ref[...] = (acc_ref[...] * inv_s).astype(o_ref.dtype)


# --------------------------------------------------------------------------- #
# Tiling heuristics (generation-aware)
# --------------------------------------------------------------------------- #
def _vmem_capacity_bytes():
    try:
        return int(pltpu.get_tpu_info().vmem_capacity_bytes)
    except Exception:
        return 64 << 20  # conservative (v7x per-core VMEM)


def _tile_budget_bytes(vmem_cap):
    # ~30% headroom for Mosaic internals / output blocks; the rest split across
    # the 2x double-buffered input tile and the f32 chunk temp + scratch.
    # v7x (64 MiB)  -> ~15 MiB tiles; v5e/v6e (128 MiB) -> 16 MiB tiles.
    usable = int(vmem_cap * 0.7)
    return max(4 << 20, min(16 << 20, usable // 3))


def _choose_tiles(B, S, H, itemsize, budget):
    """Pick (TB, TS) under `budget` bytes per input tile.

    TB: divisor of B, multiple of 8 (or B itself) for sublane-dense output
        stores, preferring >= 2 batch grid steps (v7x megacore + pipelining).
    TS: multiple of 8 dividing S (full S when it already fits or S % 8 != 0).
    """
    min_seq = 8 if S % 8 == 0 else S
    row_cap = max(1, budget // max(min_seq * H * itemsize, 1))

    divisors = [d for d in range(1, B + 1) if B % d == 0]
    feasible = [d for d in divisors if d <= row_cap] or [1]
    aligned = [d for d in feasible if d % 8 == 0 or d == B]
    pool = aligned or feasible  # unaligned fallback is still correct (masked stores)
    multi = [d for d in pool if B // d >= 2]
    TB = max(multi) if multi else max(pool)

    if TB * S * H * itemsize <= budget or S % 8 != 0:
        TS = S  # fits in one sequence tile, or sequence is un-splittable
    else:
        ts = max(8, (budget // (TB * H * itemsize)) // 8 * 8)
        ts = min(ts, S)
        while ts > 8 and S % ts != 0:
            ts -= 8
        TS = ts
    return TB, TS


def _choose_sub(TB, TS, H, f32_budget):
    """Sequence sub-chunk for the in-kernel reduce (bounds the f32 temp)."""
    if TS % 8 != 0 or TB * TS * H * 4 <= f32_budget:
        return TS
    sub = max(8, (f32_budget // (TB * H * 4)) // 8 * 8)
    sub = min(sub, TS)
    while sub > 8 and TS % sub != 0:
        sub -= 8
    return sub


def _vmem_limit_bytes(TB, TS, H, sub, itemsize, vmem_cap):
    in_tile = TB * TS * H * itemsize  # double-buffered by the pipeline
    out_tile = TB * H * itemsize      # double-buffered as well
    acc = TB * H * 4                  # f32 accumulator scratch
    chunk = TB * sub * H * 4          # f32 upcast temp per chunk
    need = 2 * in_tile + 2 * out_tile + acc + chunk + (2 << 20)  # +2 MiB slack
    return int(min(max(need, 8 << 20), int(vmem_cap * 0.9)))


# --------------------------------------------------------------------------- #
# Public wrapper (matches MeanPooler.forward semantics: x.mean(dim=dim))
# --------------------------------------------------------------------------- #
def mean_pooler(x, dim: int = 1, *, tile_budget_bytes=None):
    if x.ndim < 1:
        raise ValueError("mean_pooler expects an array with at least 1 dim")
    dim = dim % x.ndim

    # Flatten leading / trailing dims around the reduced axis into (B, S, H).
    # This is a pure view (no HBM transpose), so any `dim` avoids a copy.
    # TODO(synk): dim == last axis puts H=1 on lanes; a lane-reduction kernel
    # variant would be faster there (default dim=1 on (B, S, H) is optimal).
    shape = x.shape
    B = int(jnp.prod(jnp.array(shape[:dim]))) if dim > 0 else 1
    S = shape[dim]
    H = int(jnp.prod(jnp.array(shape[dim + 1:]))) if dim + 1 < len(shape) else 1
    x3 = x.reshape(B, S, H)

    itemsize = x.dtype.itemsize
    vmem_cap = _vmem_capacity_bytes()
    budget = tile_budget_bytes if tile_budget_bytes is not None else _tile_budget_bytes(vmem_cap)
    TB, TS = _choose_tiles(B, S, H, itemsize, budget)
    sub = _choose_sub(TB, TS, H, min(4 << 20, budget))
    n_sub = TS // sub
    grid = (B // TB, S // TS)

    kernel = functools.partial(_mean_pool_kernel, inv_s=1.0 / S, sub=sub, n_sub=n_sub)

    out = pl.pallas_call(
        kernel,
        out_shape=jax.ShapeDtypeStruct((B, H), x.dtype),
        grid_spec=pltpu.PrefetchScalarGridSpec(
            num_scalar_prefetch=0,
            grid=grid,
            in_specs=[pl.BlockSpec((TB, TS, H), lambda b, k: (b, k, 0))],
            out_specs=pl.BlockSpec((TB, H), lambda b, k: (b, 0)),
            scratch_shapes=[pltpu.VMEM((TB, H), jnp.float32)],
        ),
        compiler_params=pltpu.CompilerParams(
            # batch axis parallel (megacore-shardable), S reduction axis arbitrary.
            dimension_semantics=("parallel", "arbitrary"),
            vmem_limit_bytes=_vmem_limit_bytes(TB, TS, H, sub, itemsize, vmem_cap),
        ),
        cost_estimate=pl.CostEstimate(
            flops=B * S * H,
            transcendentals=0,
            bytes_accessed=B * S * H * itemsize + B * H * itemsize,
        ),
    )(x3)

    return out.reshape(shape[:dim] + shape[dim + 1:])


if __name__ == "__main__":
    key = jax.random.PRNGKey(0)
    k1, k2, k3, k4 = jax.random.split(key, 4)

    # 1) Small f32 check at the module's default layout (B, S, H), dim=1.
    B, S, H = 2, 8, 32
    x = jax.random.normal(k1, (B, S, H), dtype=jnp.float32)
    out = jax.block_until_ready(mean_pooler(x))
    ref = jnp.mean(x, axis=1)
    assert out.shape == (B, H)
    assert jnp.allclose(out, ref, atol=1e-6, rtol=1e-6)

    # 2) bf16 input: multiple batch rows per tile, f32 accumulation path.
    B2, S2, H2 = 8, 64, 128
    x2 = jax.random.normal(k2, (B2, S2, H2), dtype=jnp.float32).astype(jnp.bfloat16)
    out2 = jax.block_until_ready(mean_pooler(x2))
    ref2 = jnp.mean(x2.astype(jnp.float32), axis=1)
    assert out2.shape == (B2, H2)
    assert jnp.allclose(out2.astype(jnp.float32), ref2, atol=1e-2, rtol=1e-2)

    # 3) B=16 exercises the >=2-batch-step (megacore-shardable) path with TB=8.
    B3, S3, H3 = 16, 40, 128
    x3 = jax.random.normal(k3, (B3, S3, H3), dtype=jnp.float32)
    out3 = jax.block_until_ready(mean_pooler(x3))
    ref3 = jnp.mean(x3, axis=1)
    assert out3.shape == (B3, H3)
    assert jnp.allclose(out3, ref3, atol=1e-5, rtol=1e-5)

    # 4) Tiny forced tile budget exercises the multi-step sequence reduction
    #    grid (acc init/accumulate/finalize) and the chunked in-kernel reduce.
    B4, S4, H4 = 16, 64, 128
    x4 = jax.random.normal(k4, (B4, S4, H4), dtype=jnp.float32).astype(jnp.bfloat16)
    out4 = jax.block_until_ready(mean_pooler(x4, tile_budget_bytes=64 * 1024))
    ref4 = jnp.mean(x4.astype(jnp.float32), axis=1)
    assert out4.shape == (B4, H4)
    assert jnp.allclose(out4.astype(jnp.float32), ref4, atol=1e-2, rtol=1e-2)

    print("KERNEL_OK")
</pallas_src>

<mosaic_0001>
module attributes {stable_mosaic.version = 11 : i64} {
  func.func @_mean_pool_kernel(%arg0: i32, %arg1: i32, %arg2: memref<2x8x32xf32, #tpu.memory_space<vmem>>, %arg3: memref<2x32xf32, #tpu.memory_space<vmem>>, %arg4: memref<2x32xf32, #tpu.memory_space<vmem>>) attributes {dimension_semantics = [#tpu.dimension_semantics<parallel>, #tpu.dimension_semantics<arbitrary>], iteration_bounds = array<i64: 1, 1>, scalar_prefetch = 0 : i64, scratch_operands = 1 : i64, tpu.core_type = #tpu.core_type<tc>, window_params = [{transform_indices = @transform_0, window_bounds = array<i64: 2, 8, 32>}, {transform_indices = @transform_1, window_bounds = array<i64: 2, 32>}]} {
    %c0 = arith.constant 0 : index
    %c0_0 = arith.constant 0 : index
    %c0_1 = arith.constant 0 : index
    %0 = vector.load %arg2[%c0, %c0_0, %c0_1] : memref<2x8x32xf32, #tpu.memory_space<vmem>>, vector<2x8x32xf32>
    %cst = arith.constant dense<0.000000e+00> : vector<2x32xf32>
    %1 = vector.multi_reduction <add>, %0, %cst [1] : vector<2x8x32xf32> to vector<2x32xf32>
    %c0_i32 = arith.constant 0 : i32
    %2 = arith.cmpi eq, %arg1, %c0_i32 : i32
    %3 = arith.extui %2 : i1 to i32
    %c0_i32_2 = arith.constant 0 : i32
    %4 = arith.cmpi ne, %3, %c0_i32_2 : i32
    scf.if %4 {
      %c0_7 = arith.constant 0 : index
      %c0_8 = arith.constant 0 : index
      %11 = vector.load %arg4[%c0_7, %c0_8] : memref<2x32xf32, #tpu.memory_space<vmem>>, vector<2x32xf32>
      tpu.vector_store %arg4[%c0_7, %c0_8], %1 {strides = array<i32>} : memref<2x32xf32, #tpu.memory_space<vmem>>, vector<2x32xf32>,
    } else {
    }
    %c0_i32_3 = arith.constant 0 : i32
    %5 = arith.cmpi ne, %arg1, %c0_i32_3 : i32
    %6 = arith.extui %5 : i1 to i32
    %c0_i32_4 = arith.constant 0 : i32
    %7 = arith.cmpi ne, %6, %c0_i32_4 : i32
    scf.if %7 {
      %c0_7 = arith.constant 0 : index
      %c0_8 = arith.constant 0 : index
      %11 = vector.load %arg4[%c0_7, %c0_8] : memref<2x32xf32, #tpu.memory_space<vmem>>, vector<2x32xf32>
      %12 = arith.addf %11, %1 : vector<2x32xf32>
      %c0_9 = arith.constant 0 : index
      %c0_10 = arith.constant 0 : index
      %13 = vector.load %arg4[%c0_9, %c0_10] : memref<2x32xf32, #tpu.memory_space<vmem>>, vector<2x32xf32>
      tpu.vector_store %arg4[%c0_9, %c0_10], %12 {strides = array<i32>} : memref<2x32xf32, #tpu.memory_space<vmem>>, vector<2x32xf32>,
    } else {
    }
    %c0_i32_5 = arith.constant 0 : i32
    %8 = arith.cmpi eq, %arg1, %c0_i32_5 : i32
    %9 = arith.extui %8 : i1 to i32
    %c0_i32_6 = arith.constant 0 : i32
    %10 = arith.cmpi ne, %9, %c0_i32_6 : i32
    scf.if %10 {
      %c0_7 = arith.constant 0 : index
      %c0_8 = arith.constant 0 : index
      %11 = vector.load %arg4[%c0_7, %c0_8] : memref<2x32xf32, #tpu.memory_space<vmem>>, vector<2x32xf32>
      %cst_9 = arith.constant 1.250000e-01 : f32
      %12 = vector.broadcast %cst_9 : f32 to vector<2x32xf32>
      %13 = arith.mulf %11, %12 : vector<2x32xf32>
      %c0_10 = arith.constant 0 : index
      %c0_11 = arith.constant 0 : index
      %14 = vector.load %arg3[%c0_10, %c0_11] : memref<2x32xf32, #tpu.memory_space<vmem>>, vector<2x32xf32>
      tpu.vector_store %arg3[%c0_10, %c0_11], %13 {strides = array<i32>} : memref<2x32xf32, #tpu.memory_space<vmem>>, vector<2x32xf32>,
    } else {
    }
    return
  }
  func.func @transform_0(%arg0: i32, %arg1: i32) -> (i32, i32, i32) {
    %c0_i32 = arith.constant 0 : i32
    %c0_i32_0 = arith.constant 0 : i32
    return %arg0, %arg1, %c0_i32 : i32, i32, i32
  }
  func.func @transform_1(%arg0: i32, %arg1: i32) -> (i32, i32) {
    %c0_i32 = arith.constant 0 : i32
    %c0_i32_0 = arith.constant 0 : i32
    return %arg0, %c0_i32 : i32, i32
  }
}

</mosaic_0001>

<llo_original>
// kernel: tpu_custom_call.1
$region0: #{tpu_custom_call.1}
  #allocation0 [shape = 'u32[]', space=smem, size = 0x4, offset = 0x4, fixed_abs, tag = 'smem constant byte address 0x4 - core index']
  #allocation1 [shape = 'u32[144,128]{1,0:T(1,128)}', space=vmem, size = 0x12000, scoped, tag = 'internal scratch']
  #allocation2 [shape = 'f32[2,32]{1,0:T(2,128)}', space=vmem, size = 0x400, scoped, tag = 'scratch operand']
  %s0 = inlined_call_operand.hbm [shape: f32[2,8,32], index: 0, kind: input, shape index: {}]
  %s1 = inlined_call_operand.hbm [shape: f32[2,32], index: 1, kind: output, shape index: {}]
  %s2 = sld [smem:[#allocation0]]
  $region30: #{tpu_custom_call.1} parent=0
    _
  %s4 = ssub.s32 1, %s2
  %s5 = scalar_select 0, %s4, %s2
  $region1: #{tpu_custom_call.1} parent=0
    #allocation3 [shape = 'u8[8192]{0}', space=vmem, size = 0x2000, scoped, tag = 'input window, operand 0, single buffered']
    #allocation4 [shape = 's32[1]{0}', space=sflag, size = 0x4, scoped, tag = 'scoped memory for tpu_custom_call.1']
    #allocation5 [shape = 's32[1]{0}', space=sflag, size = 0x4, scoped, tag = 'scoped memory for tpu_custom_call.1']
    #allocation6 [shape = 'u8[1024]{0}', space=vmem, size = 0x400, scoped, tag = 'output window, operand 0, single buffered']
    %6 = vsyncpa [#allocation4], 0
    %7 = vsyncpa [#allocation5], 0
    // Predicated region
    $region2: #{tpu_custom_call.1} parent=1 // pred_check
      _
    $region3: #{tpu_custom_call.1} parent=1 // pred_check_branch
      %9 = sbr.rel (0) target = $region5
    $region4: #{tpu_custom_call.1} parent=1 // pred_region
      %s11 = ssub.s32 256, 256
      %12 = vsyncadd [#allocation4], %s11
      %s13 = sshll.u32 [#allocation3], 4
      %s14 = int_to_ptr.vmem [resolvable:$true] %s13
      %19 = dma.hbm_to_vmem [thread:$0]  %s0, 256, %s14, [#allocation4], 128, 128, 8
    $region5: #{tpu_custom_call.1} parent=1 // pred_fallthru
      _
    // Predicated region
    $region6: #{tpu_custom_call.1} parent=1 // pred_check
      _
    $region7: #{tpu_custom_call.1} parent=1 // pred_check_branch
      %21 = sbr.rel (0) target = $region9
    $region8: #{tpu_custom_call.1} parent=1 // pred_region
      %22 = dma.done [#allocation4], 256
    $region9: #{tpu_custom_call.1} parent=1 // pred_fallthru
      _
    %v23 = vld [vmem:[#allocation3] sm:$0xff]
    %v24 = vld [vmem:[#allocation3 + $0x8] sm:$0xff]
    %vm25 = vcmask 261120
    %v26 = vsel %vm25, %v23, 0.0
    %v27 = vrot.slane %v26, 4
    %v28 = vadd.f32 %v26, %v27
    %v29 = vrot.slane %v28, 2
    %v30 = vadd.f32 %v28, %v29
    %v31 = vrot.slane %v30, 1
    %v32 = vadd.f32 %v30, %v31
    %v33 = vsel %vm25, %v24, 0.0
    %v34 = vrot.slane %v33, 4
    %v35 = vadd.f32 %v33, %v34
    %v36 = vrot.slane %v35, 2
    %v37 = vadd.f32 %v35, %v36
    %v38 = vrot.slane %v37, 1
    %v39 = vadd.f32 %v37, %v38
    %p40 = scmp.eq.s32.totalorder 0, 0
    // Predicated region
    $region10: #{tpu_custom_call.1} parent=1 // pred_check
      %p41 = pneg %p40
    $region11: #{tpu_custom_call.1} parent=1 // pred_check_branch
      %43 = sbr.rel (%p41) target = $region13
    $region12: #{tpu_custom_call.1} parent=1 // pred_region
      %vm46 = vcmask 1041409
      %v47 = vsel %vm46, %v39, %v32
      %vm49 = vcmask 254976
      %50 = vst.msk [vmem:[#allocation2] sm:$0x3] %vm49, %v47
    $region13: #{tpu_custom_call.1} parent=1 // pred_fallthru
      _
    %p51 = scmp.ne.s32.totalorder 0, 0
    // Predicated region
    $region14: #{tpu_custom_call.1} parent=1 // pred_check
      %p52 = pneg %p51
    $region15: #{tpu_custom_call.1} parent=1 // pred_check_branch
      %54 = sbr.rel (%p52) target = $region17
    $region16: #{tpu_custom_call.1} parent=1 // pred_region
      %v55 = vld [vmem:[#allocation2] sm:$0x3]
      %vm58 = vcmask 1041409
      %v59 = vsel %vm58, %v39, %v32
      %v61 = vadd.f32 %v55, %v59
      %vm62 = vcmask 254976
      %63 = vst.msk [vmem:[#allocation2] sm:$0x3] %vm62, %v61
    $region17: #{tpu_custom_call.1} parent=1 // pred_fallthru
      _
    // Predicated region
    $region18: #{tpu_custom_call.1} parent=1 // pred_check
      %p64 = pneg %p40
    $region19: #{tpu_custom_call.1} parent=1 // pred_check_branch
      %66 = sbr.rel (%p64) target = $region21
    $region20: #{tpu_custom_call.1} parent=1 // pred_region
      %v67 = vld [vmem:[#allocation2] sm:$0x3]
      %v68 = vmul.f32 %v67, 0.125
      %vm69 = vcmask 254976
      %70 = vst.msk [vmem:[#allocation6] sm:$0x3] %vm69, %v68
    $region21: #{tpu_custom_call.1} parent=1 // pred_fallthru
      _
    // Predicated region
    $region22: #{tpu_custom_call.1} parent=1 // pred_check
      _
    $region23: #{tpu_custom_call.1} parent=1 // pred_check_branch
      %72 = sbr.rel (0) target = $region25
    $region24: #{tpu_custom_call.1} parent=1 // pred_region
      %s74 = ssub.s32 32, 32
      %75 = vsyncadd [#allocation5], %s74
      %s77 = sshll.u32 [#allocation6], 4
      %s78 = int_to_ptr.vmem [resolvable:$true] %s77
      %80 = dma.vmem_to_hbm [thread:$0]  %s78, 32, %s1, [#allocation5]
    $region25: #{tpu_custom_call.1} parent=1 // pred_fallthru
      _
    // Predicated region
    $region26: #{tpu_custom_call.1} parent=1 // pred_check
      _
    $region27: #{tpu_custom_call.1} parent=1 // pred_check_branch
      %82 = sbr.rel (0) target = $region29
    $region28: #{tpu_custom_call.1} parent=1 // pred_region
      %83 = dma.done [#allocation5], 32
    $region29: #{tpu_custom_call.1} parent=1 // pred_fallthru
      _
    %84 = vsyncpa [#allocation4], 1
    %85 = vsyncpa [#allocation5], 1

</llo_original>
